<compile_context>
chip_gen: v6e
topology: v6e:2x2x1
jax: 0.10.0
libtpu: 0.0.40
codegen_flags: <defaults>
</compile_context>

<pallas_src>
import math

import jax
import jax.numpy as jnp
from jax.experimental import pallas as pl
from jax.experimental.pallas import tpu as pltpu


# ----------------------------- helpers --------------------------------------

def _round_up(n, m):
    return ((n + m - 1) // m) * m


def _largest_tile(total, target, unit=128):
    """Largest multiple of `unit` that divides `total` and is <= max(target, unit).

    `total` must itself be a multiple of `unit`.
    """
    t = min(max(target, unit), total)
    t = (t // unit) * unit
    while total % t:
        t -= unit
    return t


def _vmem_budget_bytes():
    """~75% of physical VMEM: ~96 MiB on v5e/v6e (128 MiB), ~48 MiB on v7x (64 MiB)."""
    cap = 128 << 20
    try:
        info = pltpu.get_tpu_info()
        cap = int(getattr(info, "vmem_capacity_bytes", cap) or cap)
    except Exception:
        pass
    return int(cap * 3 // 4)


def _tile_footprint_bytes(tm, tn, tk, x_isz, w_isz, out_isz):
    x_t = tm * tk * x_isz
    w_t = 2 * tk * tn * w_isz           # W1 tile + W2 tile
    b_t = 2 * tn * 4                    # f32 biases
    o_t = tm * tn * out_isz
    acc = 2 * tm * tn * 4               # f32 accumulator scratch (single-buffered)
    epi = 2 * tm * tn * 4               # epilogue temporaries headroom
    return 2 * (x_t + w_t + b_t + o_t) + acc + epi   # inputs/outputs double-buffered


# ------------------------------ kernel --------------------------------------

def _swiglu_kernel(x_ref, w1_ref, w2_ref, b1_ref, b2_ref, o_ref,
                   acc1_ref, acc2_ref):
    k = pl.program_id(2)

    @pl.when(k == 0)
    def _():
        acc1_ref[...] = jnp.zeros_like(acc1_ref)
        acc2_ref[...] = jnp.zeros_like(acc2_ref)

    x = x_ref[...]
    acc1_ref[...] += jnp.dot(x, w1_ref[...], preferred_element_type=jnp.float32)
    acc2_ref[...] += jnp.dot(x, w2_ref[...], preferred_element_type=jnp.float32)

    @pl.when(k == pl.num_programs(2) - 1)
    def _():
        h1 = acc1_ref[...] + b1_ref[...]          # f32
        h2 = acc2_ref[...] + b2_ref[...]          # f32
        gate = h1 * jax.nn.sigmoid(h1)            # SiLU in f32 (sigmoid on EUP)
        o_ref[...] = (gate * h2).astype(o_ref.dtype)


# --------------------------- weight preparation ------------------------------

def prepare_swiglu_params(w1_t, b1, w2_t, b2, *, compute_dtype="auto",
                          tn=512, tk_max=None):
    """One-time weight preparation (call at weight-load time, NOT per forward).

    w*_t: (in_features, out_features)  -- pre-transposed nn.Linear weights.
    b*:   (out_features,)
    """
    K, N = w1_t.shape
    assert w2_t.shape == (K, N) and b1.shape == (N,) and b2.shape == (N,)

    if isinstance(compute_dtype, str) and compute_dtype == "auto":
        compute_dtype = jnp.bfloat16 if w1_t.dtype == jnp.float32 else w1_t.dtype
    elif compute_dtype is None:
        compute_dtype = w1_t.dtype
    compute_dtype = jnp.dtype(compute_dtype)
    w_isz = compute_dtype.itemsize

    # K is tiled only when large; padding (if any) happens once, here.
    if tk_max is None:
        tk_max = 4096 if w_isz <= 2 else 2048
    if K <= tk_max:
        tk, K_pad = K, K
    else:
        tk = tk_max                                  # multiple of 128
        K_pad = _round_up(K, tk)

    tn = max(128, min(int(tn), _round_up(N, 128)))
    tn = _round_up(tn, 128)
    N_pad = _round_up(N, tn)

    if (K_pad, N_pad) != (K, N):
        pad = ((0, K_pad - K), (0, N_pad - N))
        w1_t = jnp.pad(w1_t, pad)
        w2_t = jnp.pad(w2_t, pad)
    if N_pad != N:
        b1 = jnp.pad(b1, (0, N_pad - N))
        b2 = jnp.pad(b2, (0, N_pad - N))

    return dict(
        w1=w1_t.astype(compute_dtype),
        w2=w2_t.astype(compute_dtype),
        b1=b1.reshape(1, N_pad).astype(jnp.float32),
        b2=b2.reshape(1, N_pad).astype(jnp.float32),
        K=K, N=N, K_pad=K_pad, N_pad=N_pad, tk=tk, tn=tn,
        compute_dtype=compute_dtype,
    )


# ------------------------------ forward --------------------------------------

def swiglu_apply(x, params, *, tm=None):
    """SwiGLU forward using prepared params.  x: (..., in_features)."""
    K, N = params["K"], params["N"]
    K_pad, N_pad = params["K_pad"], params["N_pad"]
    tk, tn = params["tk"], params["tn"]
    cdt = params["compute_dtype"]
    assert x.shape[-1] == K

    lead = x.shape[:-1]
    M = math.prod(lead) if lead else 1
    out_dtype = x.dtype
    x_isz = jnp.dtype(cdt).itemsize
    out_isz = jnp.dtype(out_dtype).itemsize

    # Row tile large enough that weight re-streaming amortizes (v6e needs
    # ~650 f/B, v7x ~310 f/B wrt weight traffic); clamped for small M.
    if tm is None:
        tm = 1024 if x_isz <= 2 else 512
    tm = max(8, min(int(tm), _round_up(M, 8)))
    tm = _round_up(tm, 8)

    # Fit the double-buffered tile footprint into generation-aware VMEM.
    # Shrink tn first (does not hurt weight-stream intensity), tm only last.
    budget = _vmem_budget_bytes()
    while _tile_footprint_bytes(tm, tn, tk, x_isz, x_isz, out_isz) > budget:
        if tn > 128:
            tn = _largest_tile(N_pad, tn // 2)
        elif tm > 8:
            tm = max(8, _round_up(tm // 2, 8))
        else:
            break

    M_pad = _round_up(M, tm)
    num_m, num_n, nk = M_pad // tm, N_pad // tn, K_pad // tk

    # v7x megacore: avoid a degenerate 1x1 parallel extent if N can be split.
    if num_m == 1 and num_n == 1 and N_pad >= 256:
        tn = _largest_tile(N_pad, N_pad // 2)
        num_n = N_pad // tn

    # Operand residency: pick the grid ordering with lower estimated HBM traffic.
    bytes_w = 2 * K_pad * N_pad * x_isz
    bytes_x = M_pad * K_pad * x_isz
    act_traffic = num_m * bytes_w + (bytes_x if nk == 1 else num_n * bytes_x)
    wgt_traffic = num_n * bytes_x + (bytes_w if nk == 1 else num_m * bytes_w)
    weight_stationary = wgt_traffic < act_traffic

    x2d = x.reshape(M, K).astype(cdt)
    if M_pad != M or K_pad != K:
        x2d = jnp.pad(x2d, ((0, M_pad - M), (0, K_pad - K)))

    if weight_stationary:
        grid = (num_n, num_m, nk)
        x_map = lambda j, i, k: (i, k)
        w_map = lambda j, i, k: (k, j)
        b_map = lambda j, i, k: (0, j)
        o_map = lambda j, i, k: (i, j)
    else:
        grid = (num_m, num_n, nk)
        x_map = lambda i, j, k: (i, k)
        w_map = lambda i, j, k: (k, j)
        b_map = lambda i, j, k: (0, j)
        o_map = lambda i, j, k: (i, j)

    footprint = _tile_footprint_bytes(tm, tn, tk, x_isz, x_isz, out_isz)
    vmem_limit = int(min(budget, max(32 << 20, int(footprint * 1.25))))

    out2d = pl.pallas_call(
        _swiglu_kernel,
        out_shape=jax.ShapeDtypeStruct((M_pad, N_pad), out_dtype),
        grid_spec=pltpu.PrefetchScalarGridSpec(
            num_scalar_prefetch=0,
            grid=grid,
            in_specs=[
                pl.BlockSpec((tm, tk), x_map),    # x rows
                pl.BlockSpec((tk, tn), w_map),    # W1 tile
                pl.BlockSpec((tk, tn), w_map),    # W2 tile
                pl.BlockSpec((1, tn), b_map),     # b1 tile (f32)
                pl.BlockSpec((1, tn), b_map),     # b2 tile (f32)
            ],
            out_specs=pl.BlockSpec((tm, tn), o_map),
            scratch_shapes=[
                pltpu.VMEM((tm, tn), jnp.float32),   # acc1
                pltpu.VMEM((tm, tn), jnp.float32),   # acc2
            ],
        ),
        compiler_params=pltpu.CompilerParams(
            dimension_semantics=("parallel", "parallel", "arbitrary"),
            vmem_limit_bytes=vmem_limit,
        ),
    )(x2d, params["w1"], params["w2"], params["b1"], params["b2"])

    out = out2d[:M, :N]
    return out.reshape(*lead, N)


def swiglu(x, w1_t, b1, w2_t, b2, *, compute_dtype="auto", tm=None, tn=512):
    """Convenience wrapper: prepares weights and applies in one call.

    For production, call prepare_swiglu_params() ONCE at weight-load time and
    swiglu_apply() per forward (avoids re-padding / re-casting weights).
    """
    params = prepare_swiglu_params(w1_t, b1, w2_t, b2,
                                   compute_dtype=compute_dtype, tn=tn)
    return swiglu_apply(x, params, tm=tm)


# ------------------------------- test ----------------------------------------

def _ref_swiglu(x, w1_t, b1, w2_t, b2):
    return jax.nn.silu(x @ w1_t + b1) * (x @ w2_t + b2)


if __name__ == "__main__":
    key = jax.random.PRNGKey(0)

    def make(key, in_f, out_f, batch, seq):
        kx, kw1, kb1, kw2, kb2, key = jax.random.split(key, 6)
        x = jax.random.normal(kx, (batch, seq, in_f), jnp.float32)
        w1_t = jax.random.normal(kw1, (in_f, out_f), jnp.float32) * 0.1
        b1 = jax.random.normal(kb1, (out_f,), jnp.float32) * 0.1
        w2_t = jax.random.normal(kw2, (in_f, out_f), jnp.float32) * 0.1
        b2 = jax.random.normal(kb2, (out_f,), jnp.float32) * 0.1
        return key, x, w1_t, b1, w2_t, b2

    # Case 1: aligned small shapes, f32 compute (tight tolerance).
    key, x, w1_t, b1, w2_t, b2 = make(key, 32, 128, 2, 8)
    y = jax.block_until_ready(swiglu(x, w1_t, b1, w2_t, b2,
                                     compute_dtype=jnp.float32))
    y_ref = _ref_swiglu(x, w1_t, b1, w2_t, b2)
    assert y.shape == (2, 8, 128)
    assert jnp.allclose(y, y_ref, atol=1e-5, rtol=1e-5)

    # Case 2: ragged out_features exercising the padding path, f32 compute.
    key, x, w1_t, b1, w2_t, b2 = make(key, 32, 200, 3, 5)
    y = jax.block_until_ready(swiglu(x, w1_t, b1, w2_t, b2,
                                     compute_dtype=jnp.float32))
    y_ref = _ref_swiglu(x, w1_t, b1, w2_t, b2)
    assert y.shape == (3, 5, 200)
    assert jnp.allclose(y, y_ref, atol=1e-5, rtol=1e-5)

    # Case 3: default bf16 MXU path with weights prepared once and reused;
    # larger M also exercises the weight-stationary grid ordering.
    key, x, w1_t, b1, w2_t, b2 = make(key, 32, 128, 16, 128)
    params = prepare_swiglu_params(w1_t, b1, w2_t, b2)   # hoisted one-time prep
    y = jax.block_until_ready(swiglu_apply(x, params))
    y_ref = _ref_swiglu(x, w1_t, b1, w2_t, b2)
    assert y.shape == (16, 128, 128)
    assert jnp.allclose(y, y_ref, atol=2e-2, rtol=2e-2)

    print("KERNEL_OK")
</pallas_src>

<mosaic_0001>
module attributes {stable_mosaic.version = 11 : i64} {
  func.func @_swiglu_kernel(%arg0: i32, %arg1: i32, %arg2: i32, %arg3: memref<16x32xf32, #tpu.memory_space<vmem>>, %arg4: memref<32x128xf32, #tpu.memory_space<vmem>>, %arg5: memref<32x128xf32, #tpu.memory_space<vmem>>, %arg6: memref<1x128xf32, #tpu.memory_space<vmem>>, %arg7: memref<1x128xf32, #tpu.memory_space<vmem>>, %arg8: memref<16x128xf32, #tpu.memory_space<vmem>>, %arg9: memref<16x128xf32, #tpu.memory_space<vmem>>, %arg10: memref<16x128xf32, #tpu.memory_space<vmem>>) attributes {dimension_semantics = [#tpu.dimension_semantics<parallel>, #tpu.dimension_semantics<parallel>, #tpu.dimension_semantics<arbitrary>], iteration_bounds = array<i64: 1, 1, 1>, scalar_prefetch = 0 : i64, scratch_operands = 2 : i64, tpu.core_type = #tpu.core_type<tc>, window_params = [{transform_indices = @transform_0, window_bounds = array<i64: 16, 32>}, {transform_indices = @transform_1, window_bounds = array<i64: 32, 128>}, {transform_indices = @transform_2, window_bounds = array<i64: 32, 128>}, {transform_indices = @transform_3, window_bounds = array<i64: 1, 128>}, {transform_indices = @transform_4, window_bounds = array<i64: 1, 128>}, {transform_indices = @transform_5, window_bounds = array<i64: 16, 128>}]} {
    %c0_i32 = arith.constant 0 : i32
    %0 = arith.cmpi eq, %arg2, %c0_i32 : i32
    %1 = arith.extui %0 : i1 to i32
    %c0_i32_0 = arith.constant 0 : i32
    %2 = arith.cmpi ne, %1, %c0_i32_0 : i32
    scf.if %2 {
      %cst_17 = arith.constant 0.000000e+00 : f32
      %17 = vector.broadcast %cst_17 : f32 to vector<16x128xf32>
      %c0_18 = arith.constant 0 : index
      %c0_19 = arith.constant 0 : index
      %18 = vector.load %arg9[%c0_18, %c0_19] : memref<16x128xf32, #tpu.memory_space<vmem>>, vector<16x128xf32>
      tpu.vector_store %arg9[%c0_18, %c0_19], %17 {strides = array<i32>} : memref<16x128xf32, #tpu.memory_space<vmem>>, vector<16x128xf32>,
      %cst_20 = arith.constant 0.000000e+00 : f32
      %19 = vector.broadcast %cst_20 : f32 to vector<16x128xf32>
      %c0_21 = arith.constant 0 : index
      %c0_22 = arith.constant 0 : index
      %20 = vector.load %arg10[%c0_21, %c0_22] : memref<16x128xf32, #tpu.memory_space<vmem>>, vector<16x128xf32>
      tpu.vector_store %arg10[%c0_21, %c0_22], %19 {strides = array<i32>} : memref<16x128xf32, #tpu.memory_space<vmem>>, vector<16x128xf32>,
    } else {
    }
    %c0 = arith.constant 0 : index
    %c0_1 = arith.constant 0 : index
    %3 = vector.load %arg3[%c0, %c0_1] : memref<16x32xf32, #tpu.memory_space<vmem>>, vector<16x32xf32>
    %c0_2 = arith.constant 0 : index
    %c0_3 = arith.constant 0 : index
    %4 = vector.load %arg9[%c0_2, %c0_3] : memref<16x128xf32, #tpu.memory_space<vmem>>, vector<16x128xf32>
    %c0_4 = arith.constant 0 : index
    %c0_5 = arith.constant 0 : index
    %5 = vector.load %arg4[%c0_4, %c0_5] : memref<32x128xf32, #tpu.memory_space<vmem>>, vector<32x128xf32>
    %cst = arith.constant dense<0.000000e+00> : vector<16x128xf32>
    %6 = tpu.matmul %3, %5, %cst {dimension_numbers = #tpu.dot_dimension_numbers<[1], [0], [0], [1], [0, 0, 1, 1], [], []>} : vector<16x32xf32>, vector<32x128xf32>, vector<16x128xf32> -> vector<16x128xf32>
    %7 = arith.addf %4, %6 : vector<16x128xf32>
    %c0_6 = arith.constant 0 : index
    %c0_7 = arith.constant 0 : index
    %8 = vector.load %arg9[%c0_6, %c0_7] : memref<16x128xf32, #tpu.memory_space<vmem>>, vector<16x128xf32>
    tpu.vector_store %arg9[%c0_6, %c0_7], %7 {strides = array<i32>} : memref<16x128xf32, #tpu.memory_space<vmem>>, vector<16x128xf32>,
    %c0_8 = arith.constant 0 : index
    %c0_9 = arith.constant 0 : index
    %9 = vector.load %arg10[%c0_8, %c0_9] : memref<16x128xf32, #tpu.memory_space<vmem>>, vector<16x128xf32>
    %c0_10 = arith.constant 0 : index
    %c0_11 = arith.constant 0 : index
    %10 = vector.load %arg5[%c0_10, %c0_11] : memref<32x128xf32, #tpu.memory_space<vmem>>, vector<32x128xf32>
    %cst_12 = arith.constant dense<0.000000e+00> : vector<16x128xf32>
    %11 = tpu.matmul %3, %10, %cst_12 {dimension_numbers = #tpu.dot_dimension_numbers<[1], [0], [0], [1], [0, 0, 1, 1], [], []>} : vector<16x32xf32>, vector<32x128xf32>, vector<16x128xf32> -> vector<16x128xf32>
    %12 = arith.addf %9, %11 : vector<16x128xf32>
    %c0_13 = arith.constant 0 : index
    %c0_14 = arith.constant 0 : index
    %13 = vector.load %arg10[%c0_13, %c0_14] : memref<16x128xf32, #tpu.memory_space<vmem>>, vector<16x128xf32>
    tpu.vector_store %arg10[%c0_13, %c0_14], %12 {strides = array<i32>} : memref<16x128xf32, #tpu.memory_space<vmem>>, vector<16x128xf32>,
    %c0_i32_15 = arith.constant 0 : i32
    %14 = arith.cmpi eq, %arg2, %c0_i32_15 : i32
    %15 = arith.extui %14 : i1 to i32
    %c0_i32_16 = arith.constant 0 : i32
    %16 = arith.cmpi ne, %15, %c0_i32_16 : i32
    scf.if %16 {
      %c0_17 = arith.constant 0 : index
      %c0_18 = arith.constant 0 : index
      %17 = vector.load %arg9[%c0_17, %c0_18] : memref<16x128xf32, #tpu.memory_space<vmem>>, vector<16x128xf32>
      %c0_19 = arith.constant 0 : index
      %c0_20 = arith.constant 0 : index
      %18 = vector.load %arg6[%c0_19, %c0_20] : memref<1x128xf32, #tpu.memory_space<vmem>>, vector<1x128xf32>
      %19 = vector.broadcast %18 : vector<1x128xf32> to vector<16x128xf32>
      %20 = arith.addf %17, %19 : vector<16x128xf32>
      %c0_21 = arith.constant 0 : index
      %c0_22 = arith.constant 0 : index
      %21 = vector.load %arg10[%c0_21, %c0_22] : memref<16x128xf32, #tpu.memory_space<vmem>>, vector<16x128xf32>
      %c0_23 = arith.constant 0 : index
      %c0_24 = arith.constant 0 : index
      %22 = vector.load %arg7[%c0_23, %c0_24] : memref<1x128xf32, #tpu.memory_space<vmem>>, vector<1x128xf32>
      %23 = vector.broadcast %22 : vector<1x128xf32> to vector<16x128xf32>
      %24 = arith.addf %21, %23 : vector<16x128xf32>
      %25 = arith.negf %20 : vector<16x128xf32>
      %26 = math.exp %25 : vector<16x128xf32>
      %cst_25 = arith.constant 1.000000e+00 : f32
      %27 = vector.broadcast %cst_25 : f32 to vector<16x128xf32>
      %28 = arith.addf %27, %26 : vector<16x128xf32>
      %29 = arith.divf %27, %28 : vector<16x128xf32>
      %30 = arith.mulf %20, %29 : vector<16x128xf32>
      %31 = arith.mulf %30, %24 : vector<16x128xf32>
      %c0_26 = arith.constant 0 : index
      %c0_27 = arith.constant 0 : index
      %32 = vector.load %arg8[%c0_26, %c0_27] : memref<16x128xf32, #tpu.memory_space<vmem>>, vector<16x128xf32>
      tpu.vector_store %arg8[%c0_26, %c0_27], %31 {strides = array<i32>} : memref<16x128xf32, #tpu.memory_space<vmem>>, vector<16x128xf32>,
    } else {
    }
    return
  }
  func.func @transform_0(%arg0: i32, %arg1: i32, %arg2: i32) -> (i32, i32) {
    %c0_i32 = arith.constant 0 : i32
    return %arg0, %arg2 : i32, i32
  }
  func.func @transform_1(%arg0: i32, %arg1: i32, %arg2: i32) -> (i32, i32) {
    %c0_i32 = arith.constant 0 : i32
    return %arg2, %arg1 : i32, i32
  }
  func.func @transform_2(%arg0: i32, %arg1: i32, %arg2: i32) -> (i32, i32) {
    %c0_i32 = arith.constant 0 : i32
    return %arg2, %arg1 : i32, i32
  }
  func.func @transform_3(%arg0: i32, %arg1: i32, %arg2: i32) -> (i32, i32) {
    %c0_i32 = arith.constant 0 : i32
    %c0_i32_0 = arith.constant 0 : i32
    return %c0_i32, %arg1 : i32, i32
  }
  func.func @transform_4(%arg0: i32, %arg1: i32, %arg2: i32) -> (i32, i32) {
    %c0_i32 = arith.constant 0 : i32
    %c0_i32_0 = arith.constant 0 : i32
    return %c0_i32, %arg1 : i32, i32
  }
  func.func @transform_5(%arg0: i32, %arg1: i32, %arg2: i32) -> (i32, i32) {
    %c0_i32 = arith.constant 0 : i32
    return %arg0, %arg1 : i32, i32
  }
}

</mosaic_0001>

<llo_original>
// kernel: tpu_custom_call.1
$region0: #{tpu_custom_call.1}
  #allocation0 [shape = 'u32[]', space=smem, size = 0x4, offset = 0x4, fixed_abs, tag = 'smem constant byte address 0x4 - core index']
  #allocation1 [shape = 'u32[144,128]{1,0:T(1,128)}', space=vmem, size = 0x12000, scoped, tag = 'internal scratch']
  #allocation2 [shape = 'f32[16,128]{1,0:T(8,128)}', space=vmem, size = 0x2000, scoped, tag = 'scratch operand']
  #allocation3 [shape = 'f32[16,128]{1,0:T(8,128)}', space=vmem, size = 0x2000, scoped, tag = 'scratch operand']
  %s0 = inlined_call_operand.hbm [shape: f32[16,32], index: 0, kind: input, shape index: {}]
  %s1 = inlined_call_operand.hbm [shape: f32[32,128], index: 1, kind: input, shape index: {}]
  %s2 = inlined_call_operand.hbm [shape: f32[32,128], index: 2, kind: input, shape index: {}]
  %s3 = inlined_call_operand.vmem [shape: f32[1,128], index: 3, kind: input, shape index: {}]
  %s4 = inlined_call_operand.vmem [shape: f32[1,128], index: 4, kind: input, shape index: {}]
  %s5 = inlined_call_operand.hbm [shape: f32[16,128], index: 5, kind: output, shape index: {}]
  %s6 = sld [smem:[#allocation0]]
  $region50: #{tpu_custom_call.1} parent=0
    _
  %s8 = ssub.s32 1, %s6
  %s9 = scalar_select 0, %s8, %s6
  $region1: #{tpu_custom_call.1} parent=0
    #allocation4 [shape = 'u8[8192]{0}', space=vmem, size = 0x2000, scoped, tag = 'input window, operand 0, single buffered']
    #allocation5 [shape = 's32[1]{0}', space=sflag, size = 0x4, scoped, tag = 'scoped memory for tpu_custom_call.1']
    #allocation6 [shape = 's32[1]{0}', space=sflag, size = 0x4, scoped, tag = 'scoped memory for tpu_custom_call.1']
    #allocation7 [shape = 'u8[16384]{0}', space=vmem, size = 0x4000, scoped, tag = 'input window, operand 1, single buffered']
    #allocation8 [shape = 's32[1]{0}', space=sflag, size = 0x4, scoped, tag = 'scoped memory for tpu_custom_call.1']
    #allocation9 [shape = 'u8[16384]{0}', space=vmem, size = 0x4000, scoped, tag = 'input window, operand 2, single buffered']
    #allocation10 [shape = 'u8[8192]{0}', space=vmem, size = 0x2000, scoped, tag = 'output window, operand 0, single buffered']
    %10 = vsyncpa [#allocation5], 0
    %11 = vsyncpa [#allocation8], 0
    %12 = vsyncpa [#allocation6], 0
    // Predicated region
    $region2: #{tpu_custom_call.1} parent=1 // pred_check
      _
    $region3: #{tpu_custom_call.1} parent=1 // pred_check_branch
      %14 = sbr.rel (0) target = $region5
    $region4: #{tpu_custom_call.1} parent=1 // pred_region
      %s16 = ssub.s32 256, 256
      %17 = vsyncadd [#allocation5], %s16
      %s18 = sshll.u32 [#allocation4], 4
      %s19 = int_to_ptr.vmem [resolvable:$true] %s18
      %24 = dma.hbm_to_vmem [thread:$0]  %s0, 256, %s19, [#allocation5], 128, 128, 8
    $region5: #{tpu_custom_call.1} parent=1 // pred_fallthru
      _
    // Predicated region
    $region6: #{tpu_custom_call.1} parent=1 // pred_check
      _
    $region7: #{tpu_custom_call.1} parent=1 // pred_check_branch
      %26 = sbr.rel (0) target = $region9
    $region8: #{tpu_custom_call.1} parent=1 // pred_region
      %s28 = ssub.s32 512, 512
      %29 = vsyncadd [#allocation8], %s28
      %s30 = sshll.u32 [#allocation7], 4
      %s31 = int_to_ptr.vmem [resolvable:$true] %s30
      %36 = dma.hbm_to_vmem [thread:$0]  %s1, 512, %s31, [#allocation8], 128, 128, 8
    $region9: #{tpu_custom_call.1} parent=1 // pred_fallthru
      _
    // Predicated region
    $region10: #{tpu_custom_call.1} parent=1 // pred_check
      _
    $region11: #{tpu_custom_call.1} parent=1 // pred_check_branch
      %38 = sbr.rel (0) target = $region13
    $region12: #{tpu_custom_call.1} parent=1 // pred_region
      %s40 = ssub.s32 512, 512
      %41 = vsyncadd [#allocation8], %s40
      %s42 = sshll.u32 [#allocation9], 4
      %s43 = int_to_ptr.vmem [resolvable:$true] %s42
      %48 = dma.hbm_to_vmem [thread:$0]  %s2, 512, %s43, [#allocation8], 128, 128, 8
    $region13: #{tpu_custom_call.1} parent=1 // pred_fallthru
      _
    // Predicated region
    $region14: #{tpu_custom_call.1} parent=1 // pred_check
      _
    $region15: #{tpu_custom_call.1} parent=1 // pred_check_branch
      %50 = sbr.rel (0) target = $region17
    $region16: #{tpu_custom_call.1} parent=1 // pred_region
      _
    $region17: #{tpu_custom_call.1} parent=1 // pred_fallthru
      _
    // Predicated region
    $region18: #{tpu_custom_call.1} parent=1 // pred_check
      _
    $region19: #{tpu_custom_call.1} parent=1 // pred_check_branch
      %52 = sbr.rel (0) target = $region21
    $region20: #{tpu_custom_call.1} parent=1 // pred_region
      _
    $region21: #{tpu_custom_call.1} parent=1 // pred_fallthru
      _
    // Predicated region
    $region22: #{tpu_custom_call.1} parent=1 // pred_check
      _
    $region23: #{tpu_custom_call.1} parent=1 // pred_check_branch
      %54 = sbr.rel (0) target = $region25
    $region24: #{tpu_custom_call.1} parent=1 // pred_region
      %55 = dma.done [#allocation5], 256
    $region25: #{tpu_custom_call.1} parent=1 // pred_fallthru
      _
    // Predicated region
    $region26: #{tpu_custom_call.1} parent=1 // pred_check
      _
    $region27: #{tpu_custom_call.1} parent=1 // pred_check_branch
      %57 = sbr.rel (0) target = $region29
    $region28: #{tpu_custom_call.1} parent=1 // pred_region
      %58 = dma.done [#allocation8], 512
    $region29: #{tpu_custom_call.1} parent=1 // pred_fallthru
      _
    // Predicated region
    $region30: #{tpu_custom_call.1} parent=1 // pred_check
      _
    $region31: #{tpu_custom_call.1} parent=1 // pred_check_branch
      %60 = sbr.rel (0) target = $region33
    $region32: #{tpu_custom_call.1} parent=1 // pred_region
      %61 = dma.done [#allocation8], 512
    $region33: #{tpu_custom_call.1} parent=1 // pred_fallthru
      _
    %p62 = scmp.eq.s32.totalorder 0, 0
    // Predicated region
    $region34: #{tpu_custom_call.1} parent=1 // pred_check
      %p63 = pneg %p62
    $region35: #{tpu_custom_call.1} parent=1 // pred_check_branch
      %65 = sbr.rel (%p63) target = $region37
    $region36: #{tpu_custom_call.1} parent=1 // pred_region
      %66 = vst [vmem:[#allocation2] sm:$0xff] 0.0
      %67 = vst [vmem:[#allocation2 + $0x8] sm:$0xff] 0.0
      %68 = vst [vmem:[#allocation3] sm:$0xff] 0.0
      %69 = vst [vmem:[#allocation3 + $0x8] sm:$0xff] 0.0
    $region37: #{tpu_custom_call.1} parent=1 // pred_fallthru
      _
    %v70 = vld [vmem:[#allocation4] sm:$0xff]
    %v71 = vld [vmem:[#allocation4 + $0x8] sm:$0xff]
    %v72 = vld [vmem:[#allocation2] sm:$0xff]
    %v73 = vld [vmem:[#allocation2 + $0x8] sm:$0xff]
    %v74 = vld [vmem:[#allocation7] sm:$0xff]
    %v75 = vld [vmem:[#allocation7 + $0x8] sm:$0xff]
    %v76 = vld [vmem:[#allocation7 + $0x10] sm:$0xff]
    %v77 = vld [vmem:[#allocation7 + $0x18] sm:$0xff]
    %vm78 = vcmask 261120
    %v80 = vsel %vm78, %v70, 0
    %v83 = vsel %vm78, %v71, 0
    %85 = vmatprep.subr.mxu0 0.0
    %86 = vmatpush1.msra.mxu0 0.0
    %87 = vmatprep.subr.mxu0 0.0
    %88 = vmatpush1.msra.mxu0 0.0
    %89 = vmatprep.subr.mxu0 0.0
    %90 = vmatpush1.msra.mxu0 0.0
    %91 = vmatprep.subr.mxu0 0.0
    %92 = vmatpush1.msra.mxu0 0.0
    %93 = vmatprep.subr.mxu0 0.0
    %94 = vmatpush1.msra.mxu0 0.0
    %95 = vmatprep.subr.mxu0 0.0
    %96 = vmatpush1.msra.mxu0 0.0
    %97 = vmatprep.subr.mxu0 0.0
    %98 = vmatpush1.msra.mxu0 0.0
    %99 = vmatprep.subr.mxu0 0.0
    %100 = vmatpush1.msra.mxu0 0.0
    %101 = vmatprep.subr.mxu0 0.0
    %102 = vmatpush1.msra.mxu0 0.0
    %103 = vmatprep.subr.mxu0 0.0
    %104 = vmatpush1.msra.mxu0 0.0
    %105 = vmatprep.subr.mxu0 0.0
    %106 = vmatpush1.msra.mxu0 0.0
    %107 = vmatprep.subr.mxu0 0.0
    %108 = vmatpush1.msra.mxu0 0.0
    %109 = vmatprep.subr.mxu0 0.0
    %110 = vmatpush1.msra.mxu0 %v77
    %111 = vmatprep.subr.mxu0 0.0
    %112 = vmatpush1.msra.mxu0 %v76
    %113 = vmatprep.subr.mxu0 0.0
    %114 = vmatpush1.msra.mxu0 %v75
    %115 = vmatprep.subr.mxu0 0.0
    %116 = vmatpush1.msra.mxu0 %v74
    %117 = vmatprep.subr.mxu0 0.0
    %118 = vmatpush2.msra.mxu0 0.0
    %119 = vmatprep.subr.mxu0 0.0
    %120 = vmatpush2.msra.mxu0 0.0
    %121 = vmatprep.subr.mxu0 0.0
    %122 = vmatpush2.msra.mxu0 0.0
    %123 = vmatprep.subr.mxu0 0.0
    %124 = vmatpush2.msra.mxu0 0.0
    %125 = vmatprep.subr.mxu0 0.0
    %126 = vmatpush2.msra.mxu0 0.0
    %127 = vmatprep.subr.mxu0 0.0
    %128 = vmatpush2.msra.mxu0 0.0
    %129 = vmatprep.subr.mxu0 0.0
    %130 = vmatpush2.msra.mxu0 0.0
    %131 = vmatprep.subr.mxu0 0.0
    %132 = vmatpush2.msra.mxu0 0.0
    %133 = vmatprep.subr.mxu0 0.0
    %134 = vmatpush2.msra.mxu0 0.0
    %135 = vmatprep.subr.mxu0 0.0
    %136 = vmatpush2.msra.mxu0 0.0
    %137 = vmatprep.subr.mxu0 0.0
    %138 = vmatpush2.msra.mxu0 0.0
    %139 = vmatprep.subr.mxu0 0.0
    %140 = vmatpush2.msra.mxu0 0.0
    %141 = vmatprep.subr.mxu0 0.0
    %142 = vmatpush2.msra.mxu0 0.0
    %143 = vmatprep.subr.mxu0 0.0
    %144 = vmatpush2.msra.mxu0 0.0
    %145 = vmatprep.subr.mxu0 0.0
    %146 = vmatpush2.msra.mxu0 0.0
    %147 = vmatprep.subr.mxu0 0.0
    %148 = vmatpush2.msra.mxu0 0.0
    %149 = vmatprep.mubr.f32.mxu0 0.0
    %150 = vmatmul.mubr.f32.gmra.mxu0 %v80
    %v151 = vpop.f32.mrf.mxu0
    %v152 = vadd.f32 0.0, %v151
    %v153 = vpop.f32.mrf.mxu0
    %154 = vmatprep.mubr.f32.mxu0 0.0
    %155 = vmatmul.mubr.f32.gmra.mxu0 %v83
    %v156 = vpop.f32.mrf.mxu0
    %v157 = vadd.f32 0.0, %v156
    %v158 = vpop.f32.mrf.mxu0
    %159 = vdwg.mxu0
    %v160 = vadd.f32 %v72, %v152
    %v161 = vadd.f32 %v73, %v157
    %162 = vst [vmem:[#allocation2] sm:$0xff] %v160
    %163 = vst [vmem:[#allocation2 + $0x8] sm:$0xff] %v161
    %v164 = vld [vmem:[#allocation3] sm:$0xff]
    %v165 = vld [vmem:[#allocation3 + $0x8] sm:$0xff]
    %v166 = vld [vmem:[#allocation9] sm:$0xff]
    %v167 = vld [vmem:[#allocation9 + $0x8] sm:$0xff]
    %v168 = vld [vmem:[#allocation9 + $0x10] sm:$0xff]
    %v169 = vld [vmem:[#allocation9 + $0x18] sm:$0xff]
    %170 = vmatprep.subr.mxu0 0.0
    %171 = vmatpush1.msra.mxu0 0.0
    %172 = vmatprep.subr.mxu0 0.0
    %173 = vmatpush1.msra.mxu0 0.0
    %174 = vmatprep.subr.mxu0 0.0
    %175 = vmatpush1.msra.mxu0 0.0
    %176 = vmatprep.subr.mxu0 0.0
    %177 = vmatpush1.msra.mxu0 0.0
    %178 = vmatprep.subr.mxu0 0.0
    %179 = vmatpush1.msra.mxu0 0.0
    %180 = vmatprep.subr.mxu0 0.0
    %181 = vmatpush1.msra.mxu0 0.0
    %182 = vmatprep.subr.mxu0 0.0
    %183 = vmatpush1.msra.mxu0 0.0
    %184 = vmatprep.subr.mxu0 0.0
    %185 = vmatpush1.msra.mxu0 0.0
    %186 = vmatprep.subr.mxu0 0.0
    %187 = vmatpush1.msra.mxu0 0.0
    %188 = vmatprep.subr.mxu0 0.0
    %189 = vmatpush1.msra.mxu0 0.0
    %190 = vmatprep.subr.mxu0 0.0
    %191 = vmatpush1.msra.mxu0 0.0
    %192 = vmatprep.subr.mxu0 0.0
    %193 = vmatpush1.msra.mxu0 0.0
    %194 = vmatprep.subr.mxu0 0.0
    %195 = vmatpush1.msra.mxu0 %v169
    %196 = vmatprep.subr.mxu0 0.0
    %197 = vmatpush1.msra.mxu0 %v168
    %198 = vmatprep.subr.mxu0 0.0
    %199 = vmatpush1.msra.mxu0 %v167
    %200 = vmatprep.subr.mxu0 0.0
    %201 = vmatpush1.msra.mxu0 %v166
    %202 = vmatprep.subr.mxu0 0.0
    %203 = vmatpush2.msra.mxu0 0.0
    %204 = vmatprep.subr.mxu0 0.0
    %205 = vmatpush2.msra.mxu0 0.0
    %206 = vmatprep.subr.mxu0 0.0
    %207 = vmatpush2.msra.mxu0 0.0
    %208 = vmatprep.subr.mxu0 0.0
    %209 = vmatpush2.msra.mxu0 0.0
    %210 = vmatprep.subr.mxu0 0.0
    %211 = vmatpush2.msra.mxu0 0.0
    %212 = vmatprep.subr.mxu0 0.0
    %213 = vmatpush2.msra.mxu0 0.0
    %214 = vmatprep.subr.mxu0 0.0
    %215 = vmatpush2.msra.mxu0 0.0
    %216 = vmatprep.subr.mxu0 0.0
    %217 = vmatpush2.msra.mxu0 0.0
    %218 = vmatprep.subr.mxu0 0.0
    %219 = vmatpush2.msra.mxu0 0.0
    %220 = vmatprep.subr.mxu0 0.0
    %221 = vmatpush2.msra.mxu0 0.0
    %222 = vmatprep.subr.mxu0 0.0
    %223 = vmatpush2.msra.mxu0 0.0
    %224 = vmatprep.subr.mxu0 0.0
    %225 = vmatpush2.msra.mxu0 0.0
    %226 = vmatprep.subr.mxu0 0.0
    %227 = vmatpush2.msra.mxu0 0.0
    %228 = vmatprep.subr.mxu0 0.0
    %229 = vmatpush2.msra.mxu0 0.0
    %230 = vmatprep.subr.mxu0 0.0
    %231 = vmatpush2.msra.mxu0 0.0
    %232 = vmatprep.subr.mxu0 0.0
    %233 = vmatpush2.msra.mxu0 0.0
    %234 = vmatprep.mubr.f32.mxu0 0.0
    %235 = vmatmul.mubr.f32.gmra.mxu0 %v80
    %v236 = vpop.f32.mrf.mxu0
    %v237 = vadd.f32 0.0, %v236
    %v238 = vpop.f32.mrf.mxu0
    %239 = vmatprep.mubr.f32.mxu0 0.0
    %240 = vmatmul.mubr.f32.gmra.mxu0 %v83
    %v241 = vpop.f32.mrf.mxu0
    %v242 = vadd.f32 0.0, %v241
    %v243 = vpop.f32.mrf.mxu0
    %244 = vdwg.mxu0
    %v245 = vadd.f32 %v164, %v237
    %v246 = vadd.f32 %v165, %v242
    %247 = vst [vmem:[#allocation3] sm:$0xff] %v245
    %248 = vst [vmem:[#allocation3 + $0x8] sm:$0xff] %v246
    // Predicated region
    $region38: #{tpu_custom_call.1} parent=1 // pred_check
      %p249 = pneg %p62
    $region39: #{tpu_custom_call.1} parent=1 // pred_check_branch
      %251 = sbr.rel (%p249) target = $region41
    $region40: #{tpu_custom_call.1} parent=1 // pred_region
      %v252 = vld [vmem:[#allocation2] sm:$0xff]
      %v253 = vld [vmem:[#allocation2 + $0x8] sm:$0xff]
      %v254 = vld [vmem:[%s3] sm:$0x1]
      %v256 = vlaneseq
      %v257 = vshrl.u32 %v256, 7
      %v258 = vsub.s32 0, %v257
      %v259 = vrot.slane %v254, %v258
      %v261 = vadd.f32 %v252, %v259
      %v262 = vadd.f32 %v253, %v259
      %v263 = vld [vmem:[#allocation3] sm:$0xff]
      %v264 = vld [vmem:[#allocation3 + $0x8] sm:$0xff]
      %v265 = vld [vmem:[%s4] sm:$0x1]
      %v267 = vlaneseq
      %v268 = vshrl.u32 %v267, 7
      %v269 = vsub.s32 0, %v268
      %v270 = vrot.slane %v265, %v269
      %v272 = vadd.f32 %v263, %v270
      %v273 = vadd.f32 %v264, %v270
      %v274 = vxor.u32 %v261, 2147483648
      %v275 = vxor.u32 %v262, 2147483648
      %v276 = vmul.f32 %v274, 1.442695
      %v277 = vpow.pop %v276
      %v278 = vmul.f32 %v275, 1.442695
      %v279 = vpow.pop %v278
      %v280 = vadd.f32 %v277, 1.0
      %v281 = vadd.f32 %v279, 1.0
      %v282 = vrcp.pop %v280
      %v283 = vmul.f32 1.0, %v282
      %v284 = vrcp.pop %v281
      %v285 = vmul.f32 1.0, %v284
      %v286 = vmul.f32 %v261, %v283
      %v287 = vmul.f32 %v262, %v285
      %v288 = vmul.f32 %v286, %v272
      %v289 = vmul.f32 %v287, %v273
      %290 = vst [vmem:[#allocation10] sm:$0xff] %v288
      %291 = vst [vmem:[#allocation10 + $0x8] sm:$0xff] %v289
    $region41: #{tpu_custom_call.1} parent=1 // pred_fallthru
      _
    // Predicated region
    $region42: #{tpu_custom_call.1} parent=1 // pred_check
      _
    $region43: #{tpu_custom_call.1} parent=1 // pred_check_branch
      %293 = sbr.rel (0) target = $region45
    $region44: #{tpu_custom_call.1} parent=1 // pred_region
      %s295 = ssub.s32 256, 256
      %296 = vsyncadd [#allocation6], %s295
      %s297 = sshll.u32 [#allocation10], 4
      %s298 = int_to_ptr.vmem [resolvable:$true] %s297
      %303 = dma.vmem_to_hbm [thread:$0]  %s298, 256, %s5, [#allocation6], 128, 128, 8
    $region45: #{tpu_custom_call.1} parent=1 // pred_fallthru
      _
    // Predicated region
    $region46: #{tpu_custom_call.1} parent=1 // pred_check
      _
    $region47: #{tpu_custom_call.1} parent=1 // pred_check_branch
      %305 = sbr.rel (0) target = $region49
    $region48: #{tpu_custom_call.1} parent=1 // pred_region
      %306 = dma.done [#allocation6], 256
    $region49: #{tpu_custom_call.1} parent=1 // pred_fallthru
      _
    %307 = vsyncpa [#allocation5], 1
    %308 = vsyncpa [#allocation8], 1
    %309 = vsyncpa [#allocation6], 1

</llo_original>
